<compile_context>
chip_gen: v5e
topology: v5e:2x2
jax: 0.10.0
libtpu: 0.0.40
codegen_flags: <defaults>
</compile_context>

<pallas_src>
import functools

import jax
import jax.numpy as jnp
from jax import lax
from jax.experimental import pallas as pl
from jax.experimental.pallas import tpu as pltpu


def _round_up(x: int, m: int) -> int:
    return ((x + m - 1) // m) * m


def _cdiv(a: int, b: int) -> int:
    return (a + b - 1) // b


def value_mlp_kernel(s_ref, w1_ref, b1_ref, w2_ref, b2_ref, w3_ref, b3_ref, o_ref):
    """One batch tile of the fused 3-layer MLP, in [feature, batch] orientation.

    s_ref:  [TB, S]  f32 (streamed, double-buffered; cast to bf16 here on the VPU)
    w1_ref: [H, S]   bf16   b1_ref: [H, 1] f32     (PyTorch [out, in] weight layout)
    w2_ref: [H, H]   bf16   b2_ref: [H, 1] f32
    w3_ref: [1, H]   bf16   b3_ref: [1, 1] f32
    o_ref:  [1, TB]  f32 (lane-dense value row)
    """
    # In-kernel bf16 cast of the streamed f32 tile (VPU slot, hidden under matmuls).
    x = s_ref[...].astype(jnp.bfloat16)                               # [TB, S]

    # Layer 1: h1[H, TB] = W1[H, S] . x[TB, S]^T  (contract both operands on S).
    # Only the small [TB, 32] input is implicitly transposed; h1/h2 stay lane-dense.
    h1 = lax.dot_general(
        w1_ref[...], x,
        dimension_numbers=(((1,), (1,)), ((), ())),
        preferred_element_type=jnp.float32)                           # [H, TB] f32
    h1 = jnp.maximum(h1 + b1_ref[...], 0.0)

    # Layer 2: h2[H, TB] = W2[H, H] @ h1[H, TB]  (plain NN matmul, lane-dense).
    h2 = jnp.dot(w2_ref[...], h1.astype(jnp.bfloat16),
                 preferred_element_type=jnp.float32)                  # [H, TB] f32
    h2 = jnp.maximum(h2 + b2_ref[...], 0.0)

    # Value head: v[1, TB] = W3[1, H] @ h2[H, TB] — lands directly on the lane axis,
    # so the output stores are full-width (no masked vst.msk, no relayout).
    v = jnp.dot(w3_ref[...], h2.astype(jnp.bfloat16),
                preferred_element_type=jnp.float32)                   # [1, TB] f32
    o_ref[...] = (v + b3_ref[...]).astype(o_ref.dtype)


def _mlp_xla(s, params):
    """Plain-XLA forward with the same cast points as the kernel (bf16 MXU inputs,
    f32 accumulation).  Used as the small-batch fast path and as the reference."""
    w1, b1, w2, b2, w3, b3 = params
    x = s.astype(jnp.bfloat16)
    h1 = jnp.maximum(jnp.dot(x, w1.T, preferred_element_type=jnp.float32) + b1.T, 0.0)
    h2 = jnp.maximum(jnp.dot(h1.astype(jnp.bfloat16), w2.T,
                             preferred_element_type=jnp.float32) + b2.T, 0.0)
    return jnp.dot(h2.astype(jnp.bfloat16), w3.T,
                   preferred_element_type=jnp.float32) + b3.T          # [B, 1]


def value_forward_ref_f32(s, params):
    """Pure-f32 reference matching the PyTorch module's math (weights upcast)."""
    w1, b1, w2, b2, w3, b3 = params
    h1 = jnp.maximum(s @ w1.astype(jnp.float32).T + b1.T, 0.0)
    h2 = jnp.maximum(h1 @ w2.astype(jnp.float32).T + b2.T, 0.0)
    return h2 @ w3.astype(jnp.float32).T + b3.T


def _choose_batch_tile(b: int, block_b: int) -> int:
    """Largest multiple-of-128 batch tile <= block_b, shrunk (never below 128) until
    the grid has >= 4 tiles so both v7x TensorCores get work and pipeline fill is
    amortized.  Per-tile VMEM is a few MiB even at tb=4096, well under all limits."""
    tb = min(_round_up(block_b, 128), _round_up(b, 128))
    while tb > 128 and _cdiv(b, tb) < 4:
        tb = max(128, ((tb // 2) // 128) * 128)
    return tb


@functools.partial(jax.jit, static_argnames=("block_b", "force_pallas"))
def value_forward(s, params, *, block_b: int = 4096, force_pallas: bool = False):
    """s: [B, s_dim] float32 -> value [B, 1] float32."""
    w1, b1, w2, b2, w3, b3 = params
    B, s_dim = s.shape
    hv = w1.shape[0]                     # weights in PyTorch [out, in] layout

    # Small-batch fast path: a plain XLA fusion beats grid/DMA overhead here.
    if B <= 256 and not force_pallas:
        return _mlp_xla(s, params)

    # Tiny batches (only reachable with force_pallas=True): pad to one full 128-row
    # tile (negligible).  Large batches stream unpadded — the ragged last block is
    # handled by Pallas edge masking, so there is no wrapper pad/cast pass over `s`.
    x = s
    b_eff = B
    if b_eff < 128:
        x = jnp.pad(x, ((0, 128 - b_eff), (0, 0)))
        b_eff = 128

    tb = _choose_batch_tile(b_eff, block_b)
    grid = _cdiv(b_eff, tb)

    const = lambda i: (0, 0)   # weights/biases: DMA'd once, stay resident in VMEM

    flops = 2 * b_eff * (s_dim * hv + hv * hv + hv)
    bytes_accessed = (b_eff * s_dim * 4 + b_eff * 4
                      + 2 * (s_dim * hv + hv * hv + hv) + 4 * (2 * hv + 1))

    out_row = pl.pallas_call(
        value_mlp_kernel,
        out_shape=jax.ShapeDtypeStruct((1, b_eff), jnp.float32),
        grid_spec=pltpu.PrefetchScalarGridSpec(
            num_scalar_prefetch=0,
            grid=(grid,),
            in_specs=[
                pl.BlockSpec((tb, s_dim), lambda i: (i, 0)),   # s tile (streamed f32)
                pl.BlockSpec((hv, s_dim), const),              # w1 [H, S]
                pl.BlockSpec((hv, 1), const),                  # b1 [H, 1]
                pl.BlockSpec((hv, hv), const),                 # w2 [H, H]
                pl.BlockSpec((hv, 1), const),                  # b2 [H, 1]
                pl.BlockSpec((1, hv), const),                  # w3 [1, H]
                pl.BlockSpec((1, 1), const),                   # b3 [1, 1]
            ],
            out_specs=pl.BlockSpec((1, tb), lambda i: (0, i)),
        ),
        compiler_params=pltpu.CompilerParams(
            dimension_semantics=("parallel",),   # batch tiles shard over v7x's 2 TCs
        ),
        cost_estimate=pl.CostEstimate(flops=flops, transcendentals=0,
                                      bytes_accessed=bytes_accessed),
    )(x, w1, b1, w2, b2, w3, b3)

    # Back to the module's [B, 1] contract (tiny slice + metadata reshape).
    return out_row[0, :B].reshape(B, 1)


def init_params(key, s_dim, hv_dim):
    """nn.Linear-style U(-1/sqrt(fan_in), 1/sqrt(fan_in)) init.

    Weights kept in PyTorch [out, in] layout (bf16 for the MXU / HBM stream), biases
    as f32 [out, 1] columns so they broadcast along the lane (batch) axis in-kernel."""
    ks = jax.random.split(key, 6)

    def lin(kw, kb, fan_in, fan_out):
        bound = 1.0 / (fan_in ** 0.5)
        w = jax.random.uniform(kw, (fan_out, fan_in), jnp.float32, -bound, bound)
        b = jax.random.uniform(kb, (fan_out, 1), jnp.float32, -bound, bound)
        return w.astype(jnp.bfloat16), b

    w1, b1 = lin(ks[0], ks[1], s_dim, hv_dim)
    w2, b2 = lin(ks[2], ks[3], hv_dim, hv_dim)
    w3, b3 = lin(ks[4], ks[5], hv_dim, 1)
    return (w1, b1, w2, b2, w3, b3)


if __name__ == "__main__":
    # cfg: s_dim=32, hv_dim=64
    S_DIM, HV_DIM = 32, 64
    key = jax.random.PRNGKey(0)
    k_s1, k_s2, k_p = jax.random.split(key, 3)
    params = init_params(k_p, S_DIM, HV_DIM)

    # Small demo batch (single padded 128-row tile through the Pallas path).
    B1 = 8
    s1 = jax.random.normal(k_s1, (B1, S_DIM), dtype=jnp.float32)
    out1 = jax.block_until_ready(value_forward(s1, params, force_pallas=True))
    assert out1.shape == (B1, 1), out1.shape
    assert jnp.allclose(out1, _mlp_xla(s1, params), atol=2e-3, rtol=2e-3), \
        "mismatch vs bf16-matched reference (B=8)"
    assert jnp.allclose(out1, value_forward_ref_f32(s1, params), atol=1e-1, rtol=0.0), \
        "mismatch vs fp32 reference (B=8)"

    # Multi-tile path with a ragged last block (no padding, edge-masked stores).
    B2 = 300
    s2 = jax.random.normal(k_s2, (B2, S_DIM), dtype=jnp.float32)
    out2 = jax.block_until_ready(value_forward(s2, params, force_pallas=True))
    assert out2.shape == (B2, 1), out2.shape
    assert jnp.allclose(out2, _mlp_xla(s2, params), atol=2e-3, rtol=2e-3), \
        "mismatch vs bf16-matched reference (B=300)"

    print("KERNEL_OK")
</pallas_src>

<mosaic_0001>
module attributes {stable_mosaic.version = 11 : i64} {
  func.func @value_mlp_kernel(%arg0: i32, %arg1: memref<128x32xf32, #tpu.memory_space<vmem>>, %arg2: memref<64x32xbf16, #tpu.memory_space<vmem>>, %arg3: memref<64x1xf32, #tpu.memory_space<vmem>>, %arg4: memref<64x64xbf16, #tpu.memory_space<vmem>>, %arg5: memref<64x1xf32, #tpu.memory_space<vmem>>, %arg6: memref<1x64xbf16, #tpu.memory_space<vmem>>, %arg7: memref<1x1xf32, #tpu.memory_space<vmem>>, %arg8: memref<1x128xf32, #tpu.memory_space<vmem>>) attributes {dimension_semantics = [#tpu.dimension_semantics<parallel>], iteration_bounds = array<i64: 1>, scalar_prefetch = 0 : i64, scratch_operands = 0 : i64, tpu.core_type = #tpu.core_type<tc>, window_params = [{transform_indices = @transform_0, window_bounds = array<i64: 128, 32>}, {pipeline_mode = #tpu.pipeline_mode<synchronous>, transform_indices = @transform_1, window_bounds = array<i64: 64, 32>}, {pipeline_mode = #tpu.pipeline_mode<synchronous>, transform_indices = @transform_2, window_bounds = array<i64: 64, 1>}, {pipeline_mode = #tpu.pipeline_mode<synchronous>, transform_indices = @transform_3, window_bounds = array<i64: 64, 64>}, {pipeline_mode = #tpu.pipeline_mode<synchronous>, transform_indices = @transform_4, window_bounds = array<i64: 64, 1>}, {pipeline_mode = #tpu.pipeline_mode<synchronous>, transform_indices = @transform_5, window_bounds = array<i64: 1, 64>}, {pipeline_mode = #tpu.pipeline_mode<synchronous>, transform_indices = @transform_6, window_bounds = array<i64: 1, 1>}, {transform_indices = @transform_7, window_bounds = array<i64: 1, 128>}]} {
    %c0 = arith.constant 0 : index
    %c0_0 = arith.constant 0 : index
    %0 = vector.load %arg1[%c0, %c0_0] : memref<128x32xf32, #tpu.memory_space<vmem>>, vector<128x32xf32>
    %1 = arith.truncf %0 : vector<128x32xf32> to vector<128x32xbf16>
    %c0_1 = arith.constant 0 : index
    %c0_2 = arith.constant 0 : index
    %2 = vector.load %arg2[%c0_1, %c0_2] : memref<64x32xbf16, #tpu.memory_space<vmem>>, vector<64x32xbf16>
    %cst = arith.constant dense<0.000000e+00> : vector<64x128xf32>
    %3 = tpu.matmul %2, %1, %cst {dimension_numbers = #tpu.dot_dimension_numbers<[1], [1], [0], [0], [0, 0, 1, 0], [], []>} : vector<64x32xbf16>, vector<128x32xbf16>, vector<64x128xf32> -> vector<64x128xf32>
    %c0_3 = arith.constant 0 : index
    %c0_4 = arith.constant 0 : index
    %4 = vector.load %arg3[%c0_3, %c0_4] : memref<64x1xf32, #tpu.memory_space<vmem>>, vector<64x1xf32>
    %5 = vector.broadcast %4 : vector<64x1xf32> to vector<64x128xf32>
    %6 = arith.addf %3, %5 : vector<64x128xf32>
    %cst_5 = arith.constant 0.000000e+00 : f32
    %7 = vector.broadcast %cst_5 : f32 to vector<64x128xf32>
    %8 = arith.maximumf %6, %7 : vector<64x128xf32>
    %c0_6 = arith.constant 0 : index
    %c0_7 = arith.constant 0 : index
    %9 = vector.load %arg4[%c0_6, %c0_7] : memref<64x64xbf16, #tpu.memory_space<vmem>>, vector<64x64xbf16>
    %10 = arith.truncf %8 : vector<64x128xf32> to vector<64x128xbf16>
    %cst_8 = arith.constant dense<0.000000e+00> : vector<64x128xf32>
    %11 = tpu.matmul %9, %10, %cst_8 {dimension_numbers = #tpu.dot_dimension_numbers<[1], [0], [0], [1], [0, 0, 1, 1], [], []>} : vector<64x64xbf16>, vector<64x128xbf16>, vector<64x128xf32> -> vector<64x128xf32>
    %c0_9 = arith.constant 0 : index
    %c0_10 = arith.constant 0 : index
    %12 = vector.load %arg5[%c0_9, %c0_10] : memref<64x1xf32, #tpu.memory_space<vmem>>, vector<64x1xf32>
    %13 = vector.broadcast %12 : vector<64x1xf32> to vector<64x128xf32>
    %14 = arith.addf %11, %13 : vector<64x128xf32>
    %cst_11 = arith.constant 0.000000e+00 : f32
    %15 = vector.broadcast %cst_11 : f32 to vector<64x128xf32>
    %16 = arith.maximumf %14, %15 : vector<64x128xf32>
    %c0_12 = arith.constant 0 : index
    %c0_13 = arith.constant 0 : index
    %17 = vector.load %arg6[%c0_12, %c0_13] : memref<1x64xbf16, #tpu.memory_space<vmem>>, vector<1x64xbf16>
    %18 = arith.truncf %16 : vector<64x128xf32> to vector<64x128xbf16>
    %cst_14 = arith.constant dense<0.000000e+00> : vector<1x128xf32>
    %19 = tpu.matmul %17, %18, %cst_14 {dimension_numbers = #tpu.dot_dimension_numbers<[1], [0], [0], [1], [0, 0, 1, 1], [], []>} : vector<1x64xbf16>, vector<64x128xbf16>, vector<1x128xf32> -> vector<1x128xf32>
    %c0_15 = arith.constant 0 : index
    %c0_16 = arith.constant 0 : index
    %20 = vector.load %arg7[%c0_15, %c0_16] : memref<1x1xf32, #tpu.memory_space<vmem>>, vector<1x1xf32>
    %21 = vector.broadcast %20 : vector<1x1xf32> to vector<1x128xf32>
    %22 = arith.addf %19, %21 : vector<1x128xf32>
    %c0_17 = arith.constant 0 : index
    %c0_18 = arith.constant 0 : index
    %23 = vector.load %arg8[%c0_17, %c0_18] : memref<1x128xf32, #tpu.memory_space<vmem>>, vector<1x128xf32>
    tpu.vector_store %arg8[%c0_17, %c0_18], %22 {strides = array<i32>} : memref<1x128xf32, #tpu.memory_space<vmem>>, vector<1x128xf32>,
    return
  }
  func.func @transform_0(%arg0: i32) -> (i32, i32) {
    %c0_i32 = arith.constant 0 : i32
    %c0_i32_0 = arith.constant 0 : i32
    return %arg0, %c0_i32 : i32, i32
  }
  func.func @transform_1(%arg0: i32) -> (i32, i32) {
    %c0_i32 = arith.constant 0 : i32
    %c0_i32_0 = arith.constant 0 : i32
    %c0_i32_1 = arith.constant 0 : i32
    return %c0_i32, %c0_i32_0 : i32, i32
  }
  func.func @transform_2(%arg0: i32) -> (i32, i32) {
    %c0_i32 = arith.constant 0 : i32
    %c0_i32_0 = arith.constant 0 : i32
    %c0_i32_1 = arith.constant 0 : i32
    return %c0_i32, %c0_i32_0 : i32, i32
  }
  func.func @transform_3(%arg0: i32) -> (i32, i32) {
    %c0_i32 = arith.constant 0 : i32
    %c0_i32_0 = arith.constant 0 : i32
    %c0_i32_1 = arith.constant 0 : i32
    return %c0_i32, %c0_i32_0 : i32, i32
  }
  func.func @transform_4(%arg0: i32) -> (i32, i32) {
    %c0_i32 = arith.constant 0 : i32
    %c0_i32_0 = arith.constant 0 : i32
    %c0_i32_1 = arith.constant 0 : i32
    return %c0_i32, %c0_i32_0 : i32, i32
  }
  func.func @transform_5(%arg0: i32) -> (i32, i32) {
    %c0_i32 = arith.constant 0 : i32
    %c0_i32_0 = arith.constant 0 : i32
    %c0_i32_1 = arith.constant 0 : i32
    return %c0_i32, %c0_i32_0 : i32, i32
  }
  func.func @transform_6(%arg0: i32) -> (i32, i32) {
    %c0_i32 = arith.constant 0 : i32
    %c0_i32_0 = arith.constant 0 : i32
    %c0_i32_1 = arith.constant 0 : i32
    return %c0_i32, %c0_i32_0 : i32, i32
  }
  func.func @transform_7(%arg0: i32) -> (i32, i32) {
    %c0_i32 = arith.constant 0 : i32
    %c0_i32_0 = arith.constant 0 : i32
    return %c0_i32, %arg0 : i32, i32
  }
}

</mosaic_0001>

<llo_original>
// kernel: value_forward.1
$region0: #{value_forward.1}
  #allocation0 [shape = 'u32[]', space=smem, size = 0x4, offset = 0x4, fixed_abs, tag = 'smem constant byte address 0x4 - core index']
  #allocation1 [shape = 'u32[72,128]{1,0:T(1,128)}', space=vmem, size = 0x9000, scoped, tag = 'internal scratch']
  #allocation2 [shape = 'f32[1,1]{1,0:T(1,128)S(1)}', space=vmem, size = 0x200, scoped, tag = 'scoped memory for value_forward.1']
  %s0 = inlined_call_operand.vmem [shape: f32[128,32], index: 0, kind: input, shape index: {}]
  %s1 = inlined_call_operand.vmem [shape: bf16[64,32], index: 1, kind: input, shape index: {}]
  %s2 = inlined_call_operand.vmem [shape: f32[64,1], index: 2, kind: input, shape index: {}]
  %s3 = inlined_call_operand.vmem [shape: bf16[64,64], index: 3, kind: input, shape index: {}]
  %s4 = inlined_call_operand.vmem [shape: f32[64,1], index: 4, kind: input, shape index: {}]
  %s5 = inlined_call_operand.vmem [shape: bf16[1,64], index: 5, kind: input, shape index: {}]
  %s6 = inlined_call_operand.<no memory space> [shape: f32[1,1], index: 6, kind: input, shape index: {}]
  %s7 = inlined_call_operand.vmem [shape: f32[1,128], index: 7, kind: output, shape index: {}]
  %s8 = sld [smem:[#allocation0]]
  $region38: #{value_forward.1} parent=0
    _
  %s10 = ssub.s32 1, %s8
  %s11 = scalar_select 0, %s10, %s8
  %v12 = vstv %s6
  %13 = vst [vmem:[#allocation2] sm:$0x1] %v12
  // Predicated region
  $region2: #{value_forward.1} parent=0 // pred_check
    _
  $region3: #{value_forward.1} parent=0 // pred_check_branch
    %15 = sbr.rel (0) target = $region5
  $region4: #{value_forward.1} parent=0 // pred_region
    _
  $region5: #{value_forward.1} parent=0 // pred_fallthru
    _
  // Predicated region
  $region6: #{value_forward.1} parent=0 // pred_check
    _
  $region7: #{value_forward.1} parent=0 // pred_check_branch
    %17 = sbr.rel (0) target = $region9
  $region8: #{value_forward.1} parent=0 // pred_region
    _
  $region9: #{value_forward.1} parent=0 // pred_fallthru
    _
  // Predicated region
  $region10: #{value_forward.1} parent=0 // pred_check
    _
  $region11: #{value_forward.1} parent=0 // pred_check_branch
    %19 = sbr.rel (0) target = $region13
  $region12: #{value_forward.1} parent=0 // pred_region
    _
  $region13: #{value_forward.1} parent=0 // pred_fallthru
    _
  // Predicated region
  $region14: #{value_forward.1} parent=0 // pred_check
    _
  $region15: #{value_forward.1} parent=0 // pred_check_branch
    %21 = sbr.rel (0) target = $region17
  $region16: #{value_forward.1} parent=0 // pred_region
    _
  $region17: #{value_forward.1} parent=0 // pred_fallthru
    _
  // Predicated region
  $region18: #{value_forward.1} parent=0 // pred_check
    _
  $region19: #{value_forward.1} parent=0 // pred_check_branch
    %23 = sbr.rel (0) target = $region21
  $region20: #{value_forward.1} parent=0 // pred_region
    _
  $region21: #{value_forward.1} parent=0 // pred_fallthru
    _
  // Predicated region
  $region22: #{value_forward.1} parent=0 // pred_check
    _
  $region23: #{value_forward.1} parent=0 // pred_check_branch
    %25 = sbr.rel (0) target = $region25
  $region24: #{value_forward.1} parent=0 // pred_region
    _
  $region25: #{value_forward.1} parent=0 // pred_fallthru
    _
  // Predicated region
  $region26: #{value_forward.1} parent=0 // pred_check
    _
  $region27: #{value_forward.1} parent=0 // pred_check_branch
    %27 = sbr.rel (0) target = $region29
  $region28: #{value_forward.1} parent=0 // pred_region
    _
  $region29: #{value_forward.1} parent=0 // pred_fallthru
    _
  %v29 = vld [vmem:[%s0] sm:$0xff]
  %v30 = vld [vmem:[%s0 + $0x8] sm:$0xff]
  %v31 = vld [vmem:[%s0 + $0x10] sm:$0xff]
  %v32 = vld [vmem:[%s0 + $0x18] sm:$0xff]
  %v33 = vld [vmem:[%s0 + $0x20] sm:$0xff]
  %v34 = vld [vmem:[%s0 + $0x28] sm:$0xff]
  %v35 = vld [vmem:[%s0 + $0x30] sm:$0xff]
  %v36 = vld [vmem:[%s0 + $0x38] sm:$0xff]
  %v37 = vld [vmem:[%s0 + $0x40] sm:$0xff]
  %v38 = vld [vmem:[%s0 + $0x48] sm:$0xff]
  %v39 = vld [vmem:[%s0 + $0x50] sm:$0xff]
  %v40 = vld [vmem:[%s0 + $0x58] sm:$0xff]
  %v41 = vld [vmem:[%s0 + $0x60] sm:$0xff]
  %v42 = vld [vmem:[%s0 + $0x68] sm:$0xff]
  %v43 = vld [vmem:[%s0 + $0x70] sm:$0xff]
  %v44 = vld [vmem:[%s0 + $0x78] sm:$0xff]
  %v45 = vpack.c.bf16 %v30, %v29
  %v46 = vpack.c.bf16 %v32, %v31
  %v47 = vpack.c.bf16 %v34, %v33
  %v48 = vpack.c.bf16 %v36, %v35
  %v49 = vpack.c.bf16 %v38, %v37
  %v50 = vpack.c.bf16 %v40, %v39
  %v51 = vpack.c.bf16 %v42, %v41
  %v52 = vpack.c.bf16 %v44, %v43
  %v53 = vld [vmem:[%s1] sm:$0xf]
  %v54 = vld [vmem:[%s1 + $0x4] sm:$0xf]
  %v55 = vld [vmem:[%s1 + $0x8] sm:$0xf]
  %v56 = vld [vmem:[%s1 + $0xc] sm:$0xf]
  %v57 = vld [vmem:[%s1 + $0x10] sm:$0xf]
  %v58 = vld [vmem:[%s1 + $0x14] sm:$0xf]
  %v59 = vld [vmem:[%s1 + $0x18] sm:$0xf]
  %v60 = vld [vmem:[%s1 + $0x1c] sm:$0xf]
  %v61 = vld [vmem:[%s2] sm:$0xff]
  %v62 = vld [vmem:[%s2 + $0x8] sm:$0xff]
  %v63 = vld [vmem:[%s2 + $0x10] sm:$0xff]
  %v64 = vld [vmem:[%s2 + $0x18] sm:$0xff]
  %v65 = vld [vmem:[%s2 + $0x20] sm:$0xff]
  %v66 = vld [vmem:[%s2 + $0x28] sm:$0xff]
  %v67 = vld [vmem:[%s2 + $0x30] sm:$0xff]
  %v68 = vld [vmem:[%s2 + $0x38] sm:$0xff]
  %70 = vset.pattern.permute.xlu0 0
  %71 = vperm.xlu0 %70, %v61
  %v72 = vpop.permute.xlu0 %71
  %75 = vset.pattern.permute.xlu0 0
  %76 = vperm.xlu0 %75, %v62
  %v77 = vpop.permute.xlu0 %76
  %80 = vset.pattern.permute.xlu0 0
  %81 = vperm.xlu0 %80, %v63
  %v82 = vpop.permute.xlu0 %81
  %85 = vset.pattern.permute.xlu0 0
  %86 = vperm.xlu0 %85, %v64
  %v87 = vpop.permute.xlu0 %86
  %90 = vset.pattern.permute.xlu0 0
  %91 = vperm.xlu0 %90, %v65
  %v92 = vpop.permute.xlu0 %91
  %95 = vset.pattern.permute.xlu0 0
  %96 = vperm.xlu0 %95, %v66
  %v97 = vpop.permute.xlu0 %96
  %100 = vset.pattern.permute.xlu0 0
  %101 = vperm.xlu0 %100, %v67
  %v102 = vpop.permute.xlu0 %101
  %105 = vset.pattern.permute.xlu0 0
  %106 = vperm.xlu0 %105, %v68
  %v107 = vpop.permute.xlu0 %106
  %v117 = vunpack.c.l.b16 %v53
  %v118 = vunpack.c.l.b16 %v54
  %v119 = vunpack.c.l.b16 %v55
  %v120 = vunpack.c.l.b16 %v56
  %v121 = vunpack.c.l.b16 %v57
  %v122 = vunpack.c.l.b16 %v58
  %v123 = vunpack.c.l.b16 %v59
  %v124 = vunpack.c.l.b16 %v60
  %v125 = vpack.c.b16 %v118, %v117
  %v126 = vpack.c.b16 %v120, %v119
  %v127 = vpack.c.b16 %v122, %v121
  %v128 = vpack.c.b16 %v124, %v123
  %vm129 = vcmask 261120
  %v131 = vsel %vm129, %v125, 0
  %v134 = vsel %vm129, %v126, 0
  %v137 = vsel %vm129, %v127, 0
  %v140 = vsel %vm129, %v128, 0
  %v143 = vsel %vm129, %v45, 0
  %v146 = vsel %vm129, %v46, 0
  %v149 = vsel %vm129, %v47, 0
  %v152 = vsel %vm129, %v48, 0
  %v155 = vsel %vm129, %v49, 0
  %v158 = vsel %vm129, %v50, 0
  %v161 = vsel %vm129, %v51, 0
  %v164 = vsel %vm129, %v52, 0
  %166 = vmatpush.bf16.xpose.msra.mxu0 %v164
  %167 = vmatpush.bf16.xpose.msra.mxu0 %v161
  %168 = vmatpush.bf16.xpose.msra.mxu0 %v158
  %169 = vmatpush.bf16.xpose.msra.mxu0 %v155
  %170 = vmatpush.bf16.xpose.msra.mxu0 %v152
  %171 = vmatpush.bf16.xpose.msra.mxu0 %v149
  %172 = vmatpush.bf16.xpose.msra.mxu0 %v146
  %173 = vmatpush.bf16.xpose.msra.mxu0 %v143
  %174 = vmatmul.bf16.gmra.mxu0 %v131
  %v175 = vpop.f32.mrf.mxu0
  %v176 = vadd.f32 %v72, %v175
  %v177 = vpop.f32.mrf.mxu0
  %v178 = vadd.f32 %v77, %v177
  %179 = vmatmul.bf16.gmra.mxu0 %v134
  %v180 = vpop.f32.mrf.mxu0
  %v181 = vadd.f32 %v82, %v180
  %v182 = vpop.f32.mrf.mxu0
  %v183 = vadd.f32 %v87, %v182
  %184 = vmatmul.bf16.gmra.mxu0 %v137
  %v185 = vpop.f32.mrf.mxu0
  %v186 = vadd.f32 %v92, %v185
  %v187 = vpop.f32.mrf.mxu0
  %v188 = vadd.f32 %v97, %v187
  %189 = vmatmul.bf16.gmra.mxu0 %v140
  %v190 = vpop.f32.mrf.mxu0
  %v191 = vadd.f32 %v102, %v190
  %v192 = vpop.f32.mrf.mxu0
  %v193 = vadd.f32 %v107, %v192
  %194 = vdwg.mxu0
  %v195 = vmax.f32 %v176, 0.0
  %v196 = vmax.f32 %v178, 0.0
  %v197 = vmax.f32 %v181, 0.0
  %v198 = vmax.f32 %v183, 0.0
  %v199 = vmax.f32 %v186, 0.0
  %v200 = vmax.f32 %v188, 0.0
  %v201 = vmax.f32 %v191, 0.0
  %v202 = vmax.f32 %v193, 0.0
  %v203 = vld [vmem:[%s3] sm:$0xf]
  %v204 = vld [vmem:[%s3 + $0x4] sm:$0xf]
  %v205 = vld [vmem:[%s3 + $0x8] sm:$0xf]
  %v206 = vld [vmem:[%s3 + $0xc] sm:$0xf]
  %v207 = vld [vmem:[%s3 + $0x10] sm:$0xf]
  %v208 = vld [vmem:[%s3 + $0x14] sm:$0xf]
  %v209 = vld [vmem:[%s3 + $0x18] sm:$0xf]
  %v210 = vld [vmem:[%s3 + $0x1c] sm:$0xf]
  %v211 = vpack.c.bf16 %v196, %v195
  %v212 = vpack.c.bf16 %v198, %v197
  %v213 = vpack.c.bf16 %v200, %v199
  %v214 = vpack.c.bf16 %v202, %v201
  %v215 = vld [vmem:[%s4] sm:$0xff]
  %v216 = vld [vmem:[%s4 + $0x8] sm:$0xff]
  %v217 = vld [vmem:[%s4 + $0x10] sm:$0xff]
  %v218 = vld [vmem:[%s4 + $0x18] sm:$0xff]
  %v219 = vld [vmem:[%s4 + $0x20] sm:$0xff]
  %v220 = vld [vmem:[%s4 + $0x28] sm:$0xff]
  %v221 = vld [vmem:[%s4 + $0x30] sm:$0xff]
  %v222 = vld [vmem:[%s4 + $0x38] sm:$0xff]
  %224 = vset.pattern.permute.xlu0 0
  %225 = vperm.xlu0 %224, %v215
  %v226 = vpop.permute.xlu0 %225
  %229 = vset.pattern.permute.xlu0 0
  %230 = vperm.xlu0 %229, %v216
  %v231 = vpop.permute.xlu0 %230
  %234 = vset.pattern.permute.xlu0 0
  %235 = vperm.xlu0 %234, %v217
  %v236 = vpop.permute.xlu0 %235
  %239 = vset.pattern.permute.xlu0 0
  %240 = vperm.xlu0 %239, %v218
  %v241 = vpop.permute.xlu0 %240
  %244 = vset.pattern.permute.xlu0 0
  %245 = vperm.xlu0 %244, %v219
  %v246 = vpop.permute.xlu0 %245
  %249 = vset.pattern.permute.xlu0 0
  %250 = vperm.xlu0 %249, %v220
  %v251 = vpop.permute.xlu0 %250
  %254 = vset.pattern.permute.xlu0 0
  %255 = vperm.xlu0 %254, %v221
  %v256 = vpop.permute.xlu0 %255
  %259 = vset.pattern.permute.xlu0 0
  %260 = vperm.xlu0 %259, %v222
  %v261 = vpop.permute.xlu0 %260
  %v271 = vunpack.c.l.b16 %v203
  %v272 = vunpack.c.l.b16 %v204
  %v273 = vunpack.c.l.b16 %v205
  %v274 = vunpack.c.l.b16 %v206
  %v275 = vunpack.c.l.b16 %v207
  %v276 = vunpack.c.l.b16 %v208
  %v277 = vunpack.c.l.b16 %v209
  %v278 = vunpack.c.l.b16 %v210
  %v279 = vpack.c.b16 %v272, %v271
  %v280 = vpack.c.b16 %v274, %v273
  %v281 = vpack.c.b16 %v276, %v275
  %v282 = vpack.c.b16 %v278, %v277
  %vm283 = vcmask 523264
  %v285 = vsel %vm283, %v279, 0
  %v288 = vsel %vm283, %v280, 0
  %v291 = vsel %vm283, %v281, 0
  %v294 = vsel %vm283, %v282, 0
  %296 = vmatpush.bf16.msra.mxu0 0
  %297 = vmatpush.bf16.msra.mxu0 0
  %298 = vmatpush.bf16.msra.mxu0 0
  %299 = vmatpush.bf16.msra.mxu0 0
  %300 = vmatpush.bf16.msra.mxu0 %v214
  %301 = vmatpush.bf16.msra.mxu0 %v213
  %302 = vmatpush.bf16.msra.mxu0 %v212
  %303 = vmatpush.bf16.msra.mxu0 %v211
  %304 = vmatmul.bf16.gmra.mxu0 %v285
  %v305 = vpop.f32.mrf.mxu0
  %v306 = vadd.f32 %v226, %v305
  %v307 = vpop.f32.mrf.mxu0
  %v308 = vadd.f32 %v231, %v307
  %309 = vmatmul.bf16.gmra.mxu0 %v288
  %v310 = vpop.f32.mrf.mxu0
  %v311 = vadd.f32 %v236, %v310
  %v312 = vpop.f32.mrf.mxu0
  %v313 = vadd.f32 %v241, %v312
  %314 = vmatmul.bf16.gmra.mxu0 %v291
  %v315 = vpop.f32.mrf.mxu0
  %v316 = vadd.f32 %v246, %v315
  %v317 = vpop.f32.mrf.mxu0
  %v318 = vadd.f32 %v251, %v317
  %319 = vmatmul.bf16.gmra.mxu0 %v294
  %v320 = vpop.f32.mrf.mxu0
  %v321 = vadd.f32 %v256, %v320
  %v322 = vpop.f32.mrf.mxu0
  %v323 = vadd.f32 %v261, %v322
  %324 = vdwg.mxu0
  %v325 = vmax.f32 %v306, 0.0
  %v326 = vmax.f32 %v308, 0.0
  %v327 = vmax.f32 %v311, 0.0
  %v328 = vmax.f32 %v313, 0.0
  %v329 = vmax.f32 %v316, 0.0
  %v330 = vmax.f32 %v318, 0.0
  %v331 = vmax.f32 %v321, 0.0
  %v332 = vmax.f32 %v323, 0.0
  %v333 = vld [vmem:[%s5] sm:$0x1]
  %v334 = vpack.c.bf16 %v326, %v325
  %v335 = vpack.c.bf16 %v328, %v327
  %v336 = vpack.c.bf16 %v330, %v329
  %v337 = vpack.c.bf16 %v332, %v331
  %v338 = vld [vmem:[#allocation2] sm:$0x1]
  %340 = vset.pattern.permute.xlu0 0
  %341 = vperm.xlu0 %340, %v338
  %v342 = vpop.permute.xlu0 %341
  %v344 = vperm.slane %v342, 0
  %v346 = vsel %vm283, %v333, 0
  %348 = vmatpush.bf16.msra.mxu0 0
  %349 = vmatpush.bf16.msra.mxu0 0
  %350 = vmatpush.bf16.msra.mxu0 0
  %351 = vmatpush.bf16.msra.mxu0 0
  %352 = vmatpush.bf16.msra.mxu0 %v337
  %353 = vmatpush.bf16.msra.mxu0 %v336
  %354 = vmatpush.bf16.msra.mxu0 %v335
  %355 = vmatpush.bf16.msra.mxu0 %v334
  %356 = vmatmul.bf16.gmra.mxu0 %v346
  %v357 = vpop.f32.mrf.mxu0
  %v358 = vadd.f32 %v344, %v357
  %v359 = vpop.f32.mrf.mxu0
  %360 = vdwg.mxu0
  %361 = vst [vmem:[%s7] sm:$0x1] %v358
  // Predicated region
  $region30: #{value_forward.1} parent=0 // pred_check
    _
  $region31: #{value_forward.1} parent=0 // pred_check_branch
    %363 = sbr.rel (0) target = $region33
  $region32: #{value_forward.1} parent=0 // pred_region
    _
  $region33: #{value_forward.1} parent=0 // pred_fallthru
    _
  // Predicated region
  $region34: #{value_forward.1} parent=0 // pred_check
    _
  $region35: #{value_forward.1} parent=0 // pred_check_branch
    %365 = sbr.rel (0) target = $region37
  $region36: #{value_forward.1} parent=0 // pred_region
    _
  $region37: #{value_forward.1} parent=0 // pred_fallthru
    _

</llo_original>
